<compile_context>
chip_gen: v5e
topology: v5e:2x2
jax: 0.10.0
libtpu: 0.0.40
codegen_flags: <defaults>
</compile_context>

<pallas_src>
import jax
import jax.numpy as jnp
from jax.experimental import pallas as pl
from jax.experimental.pallas import tpu as pltpu


def _round_up(x, m):
    return (x + m - 1) // m * m


def _soft_q_kernel(x_ref, a_ref, w1o_ref, w1a_ref, b1_ref, w2_ref, b2_ref,
                   w3_ref, b3_ref, q_ref):
    # fc1 on the split input halves (fused concat): bf16 MXU, f32 accumulate.
    x = x_ref[...].astype(jnp.bfloat16)                               # (TN, obs)
    a = a_ref[...].astype(jnp.bfloat16)                               # (TN, act)
    h1 = jnp.dot(x, w1o_ref[...], preferred_element_type=jnp.float32)
    h1 = h1 + jnp.dot(a, w1a_ref[...], preferred_element_type=jnp.float32)
    h1 = jnp.maximum(h1 + b1_ref[...], 0.0)                           # (TN, Hp) f32

    # fc2: full 128-lane MXU tile in bf16, f32 accumulate + epilogue.
    h2 = jnp.dot(h1.astype(jnp.bfloat16), w2_ref[...],
                 preferred_element_type=jnp.float32)
    h2 = jnp.maximum(h2 + b2_ref[...], 0.0)                           # (TN, Hp) f32

    # fc3: single output column -> VPU multiply + XLU lane reduction.  Result is
    # kept lane-major (TN,) so the store is a dense, unmasked vst.
    q = jnp.sum(h2 * w3_ref[...], axis=-1) + b3_ref[0]                # (TN,)
    q_ref[...] = q[None, None, :]                                     # (1, 1, TN)


def _choose_tiling(n, block_n):
    """Ragged-balanced batch tiling; >=2 (even) tiles when batch allows so the
    'parallel' grid axis shards across v7x's 2 TensorCores (no-op on v5e/v6e)."""
    num_tiles = pl.cdiv(n, block_n)
    if n >= 16:
        num_tiles = max(num_tiles, 2)
        num_tiles = _round_up(num_tiles, 2)
    tn = _round_up(pl.cdiv(n, num_tiles), 8)     # <8 rows of padding per tile
    return num_tiles, tn, tn * num_tiles


def soft_q_forward(x, a, params, *, block_n=1024):
    """x: (N, obs_dim), a: (N, act_dim) -> q: (N, 1) float32."""
    w1o, w1a, b1, w2, b2, w3, b3 = params
    n, obs_dim = x.shape
    act_dim = a.shape[1]
    h_pad = w2.shape[1]

    # Accept bf16 activations directly (no wrapper astype round-trip).
    if x.dtype not in (jnp.bfloat16, jnp.float32):
        x = x.astype(jnp.float32)
    if a.dtype not in (jnp.bfloat16, jnp.float32):
        a = a.astype(jnp.float32)

    num_tiles, tn, n_pad = _choose_tiling(n, block_n)
    if n_pad != n:  # ragged: zero-pad batch, slice the result back afterwards.
        x = jnp.pad(x, ((0, n_pad - n), (0, 0)))
        a = jnp.pad(a, ((0, n_pad - n), (0, 0)))
    grid = (num_tiles,)

    flops = 2 * n_pad * h_pad * (obs_dim + act_dim + h_pad + 1)
    bytes_accessed = (
        x.size * x.dtype.itemsize + a.size * a.dtype.itemsize + n_pad * 4
        + sum(int(p.size) * p.dtype.itemsize
              for p in (w1o, w1a, b1, w2, b2, w3, b3)))

    q = pl.pallas_call(
        _soft_q_kernel,
        out_shape=jax.ShapeDtypeStruct((num_tiles, 1, tn), jnp.float32),
        grid=grid,
        in_specs=[
            pl.BlockSpec((tn, obs_dim), lambda i: (i, 0)),       # x tile (streamed)
            pl.BlockSpec((tn, act_dim), lambda i: (i, 0)),       # a tile (streamed)
            pl.BlockSpec((obs_dim, h_pad), lambda i: (0, 0)),    # W1[:obs]  (resident)
            pl.BlockSpec((act_dim, h_pad), lambda i: (0, 0)),    # W1[obs:]  (resident)
            pl.BlockSpec((1, h_pad), lambda i: (0, 0)),          # b1        (resident)
            pl.BlockSpec((h_pad, h_pad), lambda i: (0, 0)),      # W2        (resident)
            pl.BlockSpec((1, h_pad), lambda i: (0, 0)),          # b2        (resident)
            pl.BlockSpec((1, h_pad), lambda i: (0, 0)),          # W3 row    (resident)
            pl.BlockSpec(memory_space=pltpu.MemorySpace.SMEM),   # b3 scalar
        ],
        # Lane-dense output: one (1, 1, tn) row per grid step -> unmasked stores.
        out_specs=pl.BlockSpec((1, 1, tn), lambda i: (i, 0, 0)),
        compiler_params=pltpu.CompilerParams(
            dimension_semantics=("parallel",),   # v7x: shard batch tiles across TCs
            vmem_limit_bytes=32 * 1024 * 1024,
        ),
        cost_estimate=pl.CostEstimate(
            flops=flops, transcendentals=0, bytes_accessed=bytes_accessed),
    )(x, a, w1o, w1a, b1, w2, b2, w3, b3)
    return q.reshape(n_pad, 1)[:n]


def init_params(key, obs_dim, act_dim, hidden_dim=256):
    """PyTorch nn.Linear default init (U(+-1/sqrt(fan_in))), stored TPU-friendly:
    weights transposed to (in, out), hidden dim zero-padded once to a multiple of
    128 lanes, W1 split into obs/act halves (fused concat), MXU weights in bf16."""
    h_pad = _round_up(hidden_dim, 128)
    in_dim = obs_dim + act_dim
    ks = jax.random.split(key, 6)

    def lin(kw, kb, fan_in, fan_out):
        bound = float(fan_in) ** -0.5
        w = jax.random.uniform(kw, (fan_in, fan_out), jnp.float32, -bound, bound)
        b = jax.random.uniform(kb, (fan_out,), jnp.float32, -bound, bound)
        return w, b

    w1, b1 = lin(ks[0], ks[1], in_dim, hidden_dim)
    w2, b2 = lin(ks[2], ks[3], hidden_dim, hidden_dim)
    w3, b3 = lin(ks[4], ks[5], hidden_dim, 1)

    pad_h = h_pad - hidden_dim
    w1p = jnp.pad(w1, ((0, 0), (0, pad_h)))                      # (in, Hp)
    w1o = w1p[:obs_dim].astype(jnp.bfloat16)                     # (obs, Hp) bf16
    w1a = w1p[obs_dim:].astype(jnp.bfloat16)                     # (act, Hp) bf16
    b1p = jnp.pad(b1, (0, pad_h))[None, :]                       # (1, Hp)  f32
    w2p = jnp.pad(w2, ((0, pad_h), (0, pad_h))).astype(jnp.bfloat16)  # (Hp, Hp)
    b2p = jnp.pad(b2, (0, pad_h))[None, :]                       # (1, Hp)  f32
    w3p = jnp.pad(w3[:, 0], (0, pad_h))[None, :]                 # (1, Hp)  f32 (VPU head)
    return (w1o, w1a, b1p, w2p, b2p, w3p, b3)                    # b3: (1,) f32 (SMEM)


def _reference_bf16(x, a, params):
    """Identical bf16-MXU math in plain JAX (tight tolerance)."""
    w1o, w1a, b1, w2, b2, w3, b3 = params
    xb, ab = x.astype(jnp.bfloat16), a.astype(jnp.bfloat16)
    h1 = jnp.maximum(
        jnp.dot(xb, w1o, preferred_element_type=jnp.float32)
        + jnp.dot(ab, w1a, preferred_element_type=jnp.float32) + b1, 0.0)
    h2 = jnp.maximum(
        jnp.dot(h1.astype(jnp.bfloat16), w2,
                preferred_element_type=jnp.float32) + b2, 0.0)
    return jnp.sum(h2 * w3, axis=-1, keepdims=True) + b3[0]


def _reference_f32(x, a, params, obs_dim, hidden_dim):
    """Original f32 PyTorch-style math on the unpadded weights (loose tol)."""
    w1o, w1a, b1, w2, b2, w3, b3 = params
    w1f = jnp.concatenate([w1o, w1a], axis=0).astype(jnp.float32)[:, :hidden_dim]
    w2f = w2.astype(jnp.float32)[:hidden_dim, :hidden_dim]
    z = jnp.concatenate([x, a], axis=1)
    h1f = jnp.maximum(z @ w1f + b1[0, :hidden_dim], 0.0)
    h2f = jnp.maximum(h1f @ w2f + b2[0, :hidden_dim], 0.0)
    return h2f @ w3[0, :hidden_dim][:, None] + b3[0]


if __name__ == "__main__":
    # Small shapes consistent with the module: obs_dim=16, act_dim=8, hidden=32.
    obs_dim, act_dim, hidden_dim = 16, 8, 32
    key = jax.random.PRNGKey(0)
    kp, kdata = jax.random.split(key)
    params = init_params(kp, obs_dim, act_dim, hidden_dim)

    fwd = jax.jit(soft_q_forward)

    # batch=8: single tile path; batch=40: multi-tile (grid>=2) ragged path.
    for batch in (8, 40):
        kx, ka, kdata = jax.random.split(kdata, 3)
        x = jax.random.normal(kx, (batch, obs_dim), jnp.float32)
        a = jax.random.normal(ka, (batch, act_dim), jnp.float32)

        q = fwd(x, a, params)
        jax.block_until_ready(q)
        assert q.shape == (batch, 1)

        q_bf16 = _reference_bf16(x, a, params)
        assert jnp.allclose(q, q_bf16, atol=1e-3), "mismatch vs bf16 reference"

        q_f32 = _reference_f32(x, a, params, obs_dim, hidden_dim)
        assert jnp.allclose(q, q_f32, atol=5e-2), "mismatch vs f32 reference"

    print("KERNEL_OK")
</pallas_src>

<mosaic_0001>
module attributes {stable_mosaic.version = 11 : i64} {
  func.func @_soft_q_kernel(%arg0: i32, %arg1: memref<8x16xf32, #tpu.memory_space<vmem>>, %arg2: memref<8x8xf32, #tpu.memory_space<vmem>>, %arg3: memref<16x128xbf16, #tpu.memory_space<vmem>>, %arg4: memref<8x128xbf16, #tpu.memory_space<vmem>>, %arg5: memref<1x128xf32, #tpu.memory_space<vmem>>, %arg6: memref<128x128xbf16, #tpu.memory_space<vmem>>, %arg7: memref<1x128xf32, #tpu.memory_space<vmem>>, %arg8: memref<1x128xf32, #tpu.memory_space<vmem>>, %arg9: memref<1xf32, #tpu.memory_space<smem>>, %arg10: memref<1x1x8xf32, #tpu.memory_space<vmem>>) attributes {dimension_semantics = [#tpu.dimension_semantics<parallel>], iteration_bounds = array<i64: 1>, scalar_prefetch = 0 : i64, scratch_operands = 0 : i64, tpu.core_type = #tpu.core_type<tc>, window_params = [{transform_indices = @transform_0, window_bounds = array<i64: 8, 16>}, {transform_indices = @transform_1, window_bounds = array<i64: 8, 8>}, {pipeline_mode = #tpu.pipeline_mode<synchronous>, transform_indices = @transform_2, window_bounds = array<i64: 16, 128>}, {pipeline_mode = #tpu.pipeline_mode<synchronous>, transform_indices = @transform_3, window_bounds = array<i64: 8, 128>}, {pipeline_mode = #tpu.pipeline_mode<synchronous>, transform_indices = @transform_4, window_bounds = array<i64: 1, 128>}, {pipeline_mode = #tpu.pipeline_mode<synchronous>, transform_indices = @transform_5, window_bounds = array<i64: 128, 128>}, {pipeline_mode = #tpu.pipeline_mode<synchronous>, transform_indices = @transform_6, window_bounds = array<i64: 1, 128>}, {pipeline_mode = #tpu.pipeline_mode<synchronous>, transform_indices = @transform_7, window_bounds = array<i64: 1, 128>}, {transform_indices = @transform_8, window_bounds = array<i64: 1>}, {transform_indices = @transform_9, window_bounds = array<i64: 1, 1, 8>}]} {
    %c0 = arith.constant 0 : index
    %c0_0 = arith.constant 0 : index
    %0 = vector.load %arg1[%c0, %c0_0] : memref<8x16xf32, #tpu.memory_space<vmem>>, vector<8x16xf32>
    %1 = arith.truncf %0 : vector<8x16xf32> to vector<8x16xbf16>
    %c0_1 = arith.constant 0 : index
    %c0_2 = arith.constant 0 : index
    %2 = vector.load %arg2[%c0_1, %c0_2] : memref<8x8xf32, #tpu.memory_space<vmem>>, vector<8x8xf32>
    %3 = arith.truncf %2 : vector<8x8xf32> to vector<8x8xbf16>
    %c0_3 = arith.constant 0 : index
    %c0_4 = arith.constant 0 : index
    %4 = vector.load %arg3[%c0_3, %c0_4] : memref<16x128xbf16, #tpu.memory_space<vmem>>, vector<16x128xbf16>
    %cst = arith.constant dense<0.000000e+00> : vector<8x128xf32>
    %5 = tpu.matmul %1, %4, %cst {dimension_numbers = #tpu.dot_dimension_numbers<[1], [0], [0], [1], [0, 0, 1, 1], [], []>} : vector<8x16xbf16>, vector<16x128xbf16>, vector<8x128xf32> -> vector<8x128xf32>
    %c0_5 = arith.constant 0 : index
    %c0_6 = arith.constant 0 : index
    %6 = vector.load %arg4[%c0_5, %c0_6] : memref<8x128xbf16, #tpu.memory_space<vmem>>, vector<8x128xbf16>
    %cst_7 = arith.constant dense<0.000000e+00> : vector<8x128xf32>
    %7 = tpu.matmul %3, %6, %cst_7 {dimension_numbers = #tpu.dot_dimension_numbers<[1], [0], [0], [1], [0, 0, 1, 1], [], []>} : vector<8x8xbf16>, vector<8x128xbf16>, vector<8x128xf32> -> vector<8x128xf32>
    %8 = arith.addf %5, %7 : vector<8x128xf32>
    %c0_8 = arith.constant 0 : index
    %c0_9 = arith.constant 0 : index
    %9 = vector.load %arg5[%c0_8, %c0_9] : memref<1x128xf32, #tpu.memory_space<vmem>>, vector<1x128xf32>
    %10 = vector.broadcast %9 : vector<1x128xf32> to vector<8x128xf32>
    %11 = arith.addf %8, %10 : vector<8x128xf32>
    %cst_10 = arith.constant 0.000000e+00 : f32
    %12 = vector.broadcast %cst_10 : f32 to vector<8x128xf32>
    %13 = arith.maximumf %11, %12 : vector<8x128xf32>
    %14 = arith.truncf %13 : vector<8x128xf32> to vector<8x128xbf16>
    %c0_11 = arith.constant 0 : index
    %c0_12 = arith.constant 0 : index
    %15 = vector.load %arg6[%c0_11, %c0_12] : memref<128x128xbf16, #tpu.memory_space<vmem>>, vector<128x128xbf16>
    %cst_13 = arith.constant dense<0.000000e+00> : vector<8x128xf32>
    %16 = tpu.matmul %14, %15, %cst_13 {dimension_numbers = #tpu.dot_dimension_numbers<[1], [0], [0], [1], [0, 0, 1, 1], [], []>} : vector<8x128xbf16>, vector<128x128xbf16>, vector<8x128xf32> -> vector<8x128xf32>
    %c0_14 = arith.constant 0 : index
    %c0_15 = arith.constant 0 : index
    %17 = vector.load %arg7[%c0_14, %c0_15] : memref<1x128xf32, #tpu.memory_space<vmem>>, vector<1x128xf32>
    %18 = vector.broadcast %17 : vector<1x128xf32> to vector<8x128xf32>
    %19 = arith.addf %16, %18 : vector<8x128xf32>
    %cst_16 = arith.constant 0.000000e+00 : f32
    %20 = vector.broadcast %cst_16 : f32 to vector<8x128xf32>
    %21 = arith.maximumf %19, %20 : vector<8x128xf32>
    %c0_17 = arith.constant 0 : index
    %c0_18 = arith.constant 0 : index
    %22 = vector.load %arg8[%c0_17, %c0_18] : memref<1x128xf32, #tpu.memory_space<vmem>>, vector<1x128xf32>
    %23 = vector.broadcast %22 : vector<1x128xf32> to vector<8x128xf32>
    %24 = arith.mulf %21, %23 : vector<8x128xf32>
    %cst_19 = arith.constant dense<0.000000e+00> : vector<8xf32>
    %25 = vector.multi_reduction <add>, %24, %cst_19 [1] : vector<8x128xf32> to vector<8xf32>
    %c0_20 = arith.constant 0 : index
    %26 = memref.load %arg9[%c0_20] : memref<1xf32, #tpu.memory_space<smem>>
    %27 = vector.broadcast %26 : f32 to vector<8xf32>
    %28 = arith.addf %25, %27 : vector<8xf32>
    %29 = vector.shape_cast %28 : vector<8xf32> to vector<1x1x8xf32>
    %c0_21 = arith.constant 0 : index
    %c0_22 = arith.constant 0 : index
    %c0_23 = arith.constant 0 : index
    %30 = vector.load %arg10[%c0_21, %c0_22, %c0_23] : memref<1x1x8xf32, #tpu.memory_space<vmem>>, vector<1x1x8xf32>
    tpu.vector_store %arg10[%c0_21, %c0_22, %c0_23], %29 {strides = array<i32>} : memref<1x1x8xf32, #tpu.memory_space<vmem>>, vector<1x1x8xf32>,
    return
  }
  func.func @transform_0(%arg0: i32) -> (i32, i32) {
    %c0_i32 = arith.constant 0 : i32
    %c0_i32_0 = arith.constant 0 : i32
    return %arg0, %c0_i32 : i32, i32
  }
  func.func @transform_1(%arg0: i32) -> (i32, i32) {
    %c0_i32 = arith.constant 0 : i32
    %c0_i32_0 = arith.constant 0 : i32
    return %arg0, %c0_i32 : i32, i32
  }
  func.func @transform_2(%arg0: i32) -> (i32, i32) {
    %c0_i32 = arith.constant 0 : i32
    %c0_i32_0 = arith.constant 0 : i32
    %c0_i32_1 = arith.constant 0 : i32
    return %c0_i32, %c0_i32_0 : i32, i32
  }
  func.func @transform_3(%arg0: i32) -> (i32, i32) {
    %c0_i32 = arith.constant 0 : i32
    %c0_i32_0 = arith.constant 0 : i32
    %c0_i32_1 = arith.constant 0 : i32
    return %c0_i32, %c0_i32_0 : i32, i32
  }
  func.func @transform_4(%arg0: i32) -> (i32, i32) {
    %c0_i32 = arith.constant 0 : i32
    %c0_i32_0 = arith.constant 0 : i32
    %c0_i32_1 = arith.constant 0 : i32
    return %c0_i32, %c0_i32_0 : i32, i32
  }
  func.func @transform_5(%arg0: i32) -> (i32, i32) {
    %c0_i32 = arith.constant 0 : i32
    %c0_i32_0 = arith.constant 0 : i32
    %c0_i32_1 = arith.constant 0 : i32
    return %c0_i32, %c0_i32_0 : i32, i32
  }
  func.func @transform_6(%arg0: i32) -> (i32, i32) {
    %c0_i32 = arith.constant 0 : i32
    %c0_i32_0 = arith.constant 0 : i32
    %c0_i32_1 = arith.constant 0 : i32
    return %c0_i32, %c0_i32_0 : i32, i32
  }
  func.func @transform_7(%arg0: i32) -> (i32, i32) {
    %c0_i32 = arith.constant 0 : i32
    %c0_i32_0 = arith.constant 0 : i32
    %c0_i32_1 = arith.constant 0 : i32
    return %c0_i32, %c0_i32_0 : i32, i32
  }
  func.func @transform_8(%arg0: i32) -> i32 {
    %c0_i32 = arith.constant 0 : i32
    %c0_i32_0 = arith.constant 0 : i32
    return %c0_i32 : i32
  }
  func.func @transform_9(%arg0: i32) -> (i32, i32, i32) {
    %c0_i32 = arith.constant 0 : i32
    %c0_i32_0 = arith.constant 0 : i32
    %c0_i32_1 = arith.constant 0 : i32
    return %arg0, %c0_i32, %c0_i32_0 : i32, i32, i32
  }
}

</mosaic_0001>

<llo_original>
// kernel: soft_q_forward.1
$region0: #{soft_q_forward.1}
  #allocation0 [shape = 'u32[]', space=smem, size = 0x4, offset = 0x4, fixed_abs, tag = 'smem constant byte address 0x4 - core index']
  #allocation1 [shape = 'u32[72,128]{1,0:T(1,128)}', space=vmem, size = 0x9000, scoped, tag = 'internal scratch']
  #allocation2 [shape = 'f32[1]{0:T(128)S(6)}', space=smem, size = 0x200, scoped, tag = 'scoped memory for soft_q_forward.1']
  %s0 = inlined_call_operand.hbm [shape: f32[8,16], index: 0, kind: input, shape index: {}]
  %s1 = inlined_call_operand.hbm [shape: f32[8,8], index: 1, kind: input, shape index: {}]
  %s2 = inlined_call_operand.hbm [shape: bf16[16,128], index: 2, kind: input, shape index: {}]
  %s3 = inlined_call_operand.vmem [shape: bf16[8,128], index: 3, kind: input, shape index: {}]
  %s4 = inlined_call_operand.vmem [shape: f32[1,128], index: 4, kind: input, shape index: {}]
  %s5 = inlined_call_operand.hbm [shape: bf16[128,128], index: 5, kind: input, shape index: {}]
  %s6 = inlined_call_operand.vmem [shape: f32[1,128], index: 6, kind: input, shape index: {}]
  %s7 = inlined_call_operand.vmem [shape: f32[1,128], index: 7, kind: input, shape index: {}]
  %s8 = inlined_call_operand.<no memory space> [shape: f32[1], index: 8, kind: input, shape index: {}]
  %s9 = inlined_call_operand.hbm [shape: f32[1,1,8], index: 9, kind: output, shape index: {}]
  %s10 = sld [smem:[#allocation0]]
  $region62: #{soft_q_forward.1} parent=0
    _
  %s12 = ssub.s32 1, %s10
  %s13 = scalar_select 0, %s12, %s10
  %14 = sst [smem:[#allocation2]] %s8
  $region1: #{soft_q_forward.1} parent=0
    #allocation3 [shape = 'u8[4096]{0}', space=vmem, size = 0x1000, scoped, tag = 'input window, operand 0, single buffered']
    #allocation4 [shape = 's32[1]{0}', space=sflag, size = 0x4, scoped, tag = 'scoped memory for soft_q_forward.1']
    #allocation5 [shape = 's32[1]{0}', space=sflag, size = 0x4, scoped, tag = 'scoped memory for soft_q_forward.1']
    #allocation6 [shape = 'u8[4096]{0}', space=vmem, size = 0x1000, scoped, tag = 'input window, operand 1, single buffered']
    #allocation7 [shape = 's32[1]{0}', space=sflag, size = 0x4, scoped, tag = 'scoped memory for soft_q_forward.1']
    #allocation8 [shape = 'u8[4096]{0}', space=vmem, size = 0x1000, scoped, tag = 'input window, operand 2, single buffered']
    #allocation9 [shape = 'u8[32768]{0}', space=vmem, size = 0x8000, scoped, tag = 'input window, operand 5, single buffered']
    #allocation10 [shape = 's32[1]{0}', space=sflag, size = 0x4, scoped, tag = 'scoped memory for soft_q_forward.1']
    #allocation11 [shape = 'u8[512]{0}', space=vmem, size = 0x400, scoped, tag = 'output window, operand 0, single buffered']
    %15 = vsyncpa [#allocation4], 0
    %16 = vsyncpa [#allocation7], 0
    %17 = vsyncpa [#allocation10], 0
    %18 = vsyncpa [#allocation5], 0
    // Predicated region
    $region2: #{soft_q_forward.1} parent=1 // pred_check
      _
    $region3: #{soft_q_forward.1} parent=1 // pred_check_branch
      %20 = sbr.rel (0) target = $region5
    $region4: #{soft_q_forward.1} parent=1 // pred_region
      %22 = vsyncadd [#allocation4], 0
      %s24 = sshll.u32 %s0, 4
      %s25 = int_to_ptr.hbm [resolvable:$true] %s24
      %s26 = sshll.u32 [#allocation3], 4
      %s27 = int_to_ptr.vmem [resolvable:$true] %s26
      %29 = dma.hbm_to_vmem [thread:$0]  %s25, 128, %s27, [#allocation4]
    $region5: #{soft_q_forward.1} parent=1 // pred_fallthru
      _
    // Predicated region
    $region6: #{soft_q_forward.1} parent=1 // pred_check
      _
    $region7: #{soft_q_forward.1} parent=1 // pred_check_branch
      %31 = sbr.rel (0) target = $region9
    $region8: #{soft_q_forward.1} parent=1 // pred_region
      %33 = vsyncadd [#allocation7], 0
      %s35 = sshll.u32 %s1, 4
      %s36 = int_to_ptr.hbm [resolvable:$true] %s35
      %s37 = sshll.u32 [#allocation6], 4
      %s38 = int_to_ptr.vmem [resolvable:$true] %s37
      %40 = dma.hbm_to_vmem [thread:$0]  %s36, 128, %s38, [#allocation7]
    $region9: #{soft_q_forward.1} parent=1 // pred_fallthru
      _
    // Predicated region
    $region10: #{soft_q_forward.1} parent=1 // pred_check
      _
    $region11: #{soft_q_forward.1} parent=1 // pred_check_branch
      %42 = sbr.rel (0) target = $region13
    $region12: #{soft_q_forward.1} parent=1 // pred_region
      %44 = vsyncadd [#allocation7], 0
      %s45 = sshll.u32 %s2, 4
      %s46 = int_to_ptr.hbm [resolvable:$true] %s45
      %s47 = sshll.u32 [#allocation8], 4
      %s48 = int_to_ptr.vmem [resolvable:$true] %s47
      %53 = dma.hbm_to_vmem [thread:$0]  %s46, 128, %s48, [#allocation7], 64, 64, 4
    $region13: #{soft_q_forward.1} parent=1 // pred_fallthru
      _
    // Predicated region
    $region14: #{soft_q_forward.1} parent=1 // pred_check
      _
    $region15: #{soft_q_forward.1} parent=1 // pred_check_branch
      %55 = sbr.rel (0) target = $region17
    $region16: #{soft_q_forward.1} parent=1 // pred_region
      _
    $region17: #{soft_q_forward.1} parent=1 // pred_fallthru
      _
    // Predicated region
    $region18: #{soft_q_forward.1} parent=1 // pred_check
      _
    $region19: #{soft_q_forward.1} parent=1 // pred_check_branch
      %57 = sbr.rel (0) target = $region21
    $region20: #{soft_q_forward.1} parent=1 // pred_region
      _
    $region21: #{soft_q_forward.1} parent=1 // pred_fallthru
      _
    // Predicated region
    $region22: #{soft_q_forward.1} parent=1 // pred_check
      _
    $region23: #{soft_q_forward.1} parent=1 // pred_check_branch
      %59 = sbr.rel (0) target = $region25
    $region24: #{soft_q_forward.1} parent=1 // pred_region
      %61 = vsyncadd [#allocation10], 0
      %s62 = sshll.u32 %s5, 4
      %s63 = int_to_ptr.hbm [resolvable:$true] %s62
      %s64 = sshll.u32 [#allocation9], 4
      %s65 = int_to_ptr.vmem [resolvable:$true] %s64
      %70 = dma.hbm_to_vmem [thread:$0]  %s63, 1024, %s65, [#allocation10], 64, 64, 4
    $region25: #{soft_q_forward.1} parent=1 // pred_fallthru
      _
    // Predicated region
    $region26: #{soft_q_forward.1} parent=1 // pred_check
      _
    $region27: #{soft_q_forward.1} parent=1 // pred_check_branch
      %72 = sbr.rel (0) target = $region29
    $region28: #{soft_q_forward.1} parent=1 // pred_region
      _
    $region29: #{soft_q_forward.1} parent=1 // pred_fallthru
      _
    // Predicated region
    $region30: #{soft_q_forward.1} parent=1 // pred_check
      _
    $region31: #{soft_q_forward.1} parent=1 // pred_check_branch
      %74 = sbr.rel (0) target = $region33
    $region32: #{soft_q_forward.1} parent=1 // pred_region
      _
    $region33: #{soft_q_forward.1} parent=1 // pred_fallthru
      _
    // Predicated region
    $region34: #{soft_q_forward.1} parent=1 // pred_check
      _
    $region35: #{soft_q_forward.1} parent=1 // pred_check_branch
      %76 = sbr.rel (0) target = $region37
    $region36: #{soft_q_forward.1} parent=1 // pred_region
      _
    $region37: #{soft_q_forward.1} parent=1 // pred_fallthru
      _
    // Predicated region
    $region38: #{soft_q_forward.1} parent=1 // pred_check
      _
    $region39: #{soft_q_forward.1} parent=1 // pred_check_branch
      %78 = sbr.rel (0) target = $region41
    $region40: #{soft_q_forward.1} parent=1 // pred_region
      %80 = dma.done [#allocation4], 128
    $region41: #{soft_q_forward.1} parent=1 // pred_fallthru
      _
    // Predicated region
    $region42: #{soft_q_forward.1} parent=1 // pred_check
      _
    $region43: #{soft_q_forward.1} parent=1 // pred_check_branch
      %82 = sbr.rel (0) target = $region45
    $region44: #{soft_q_forward.1} parent=1 // pred_region
      %84 = dma.done [#allocation7], 128
    $region45: #{soft_q_forward.1} parent=1 // pred_fallthru
      _
    // Predicated region
    $region46: #{soft_q_forward.1} parent=1 // pred_check
      _
    $region47: #{soft_q_forward.1} parent=1 // pred_check_branch
      %86 = sbr.rel (0) target = $region49
    $region48: #{soft_q_forward.1} parent=1 // pred_region
      %88 = dma.done [#allocation7], 128
    $region49: #{soft_q_forward.1} parent=1 // pred_fallthru
      _
    // Predicated region
    $region50: #{soft_q_forward.1} parent=1 // pred_check
      _
    $region51: #{soft_q_forward.1} parent=1 // pred_check_branch
      %90 = sbr.rel (0) target = $region53
    $region52: #{soft_q_forward.1} parent=1 // pred_region
      %92 = dma.done [#allocation10], 1024
    $region53: #{soft_q_forward.1} parent=1 // pred_fallthru
      _
    %v94 = vld [vmem:[#allocation3] sm:$0xff]
    %v95 = vpack.c.bf16 %v94, %v94
    %v96 = vld [vmem:[#allocation6] sm:$0xff]
    %v97 = vpack.c.bf16 %v96, %v96
    %v98 = vld [vmem:[#allocation8] sm:$0xf]
    %v99 = vld [vmem:[#allocation8 + $0x4] sm:$0xf]
    %v100 = vld [vmem:[%s3] sm:$0xf]
    %vm101 = vcmask 64512
    %v103 = vsel %vm101, %v97, 0
    %vm105 = vcmask 1043456
    %v107 = vsel %vm105, %v100, 0
    %109 = vmatpush.bf16.msra.mxu0 0
    %110 = vmatpush.bf16.msra.mxu0 0
    %111 = vmatpush.bf16.msra.mxu0 0
    %112 = vmatpush.bf16.msra.mxu0 0
    %113 = vmatpush.bf16.msra.mxu0 0
    %114 = vmatpush.bf16.msra.mxu0 0
    %115 = vmatpush.bf16.msra.mxu0 0
    %116 = vmatpush.bf16.msra.mxu0 %v107
    %117 = vmatmul.bf16.gmra.mxu0 %v103
    %v118 = vpop.f32.mrf.mxu0
    %v119 = vadd.f32 0.0, %v118
    %v120 = vpop.f32.mrf.mxu0
    %121 = vdwg.mxu0
    %v124 = vunpack.c.l.b16 %v98
    %v125 = vunpack.c.l.b16 %v99
    %v126 = vpack.c.b16 %v125, %v124
    %vm128 = vcmask 130048
    %v130 = vsel %vm128, %v95, 0
    %132 = vmatpush.bf16.msra.mxu0 0
    %133 = vmatpush.bf16.msra.mxu0 0
    %134 = vmatpush.bf16.msra.mxu0 0
    %135 = vmatpush.bf16.msra.mxu0 0
    %136 = vmatpush.bf16.msra.mxu0 0
    %137 = vmatpush.bf16.msra.mxu0 0
    %138 = vmatpush.bf16.msra.mxu0 0
    %139 = vmatpush.bf16.msra.mxu0 %v126
    %140 = vmatmul.bf16.gmra.mxu0 %v130
    %v141 = vpop.f32.mrf.mxu0
    %v142 = vadd.f32 %v119, %v141
    %v143 = vpop.f32.mrf.mxu0
    %144 = vdwg.mxu0
    %v145 = vld [vmem:[%s4] sm:$0x1]
    %v147 = vperm.slane %v145, 0
    %v149 = vadd.f32 %v142, %v147
    %v150 = vmax.f32 %v149, 0.0
    %v151 = vpack.c.bf16 %v150, %v150
    %v152 = vld [vmem:[#allocation9] sm:$0xf]
    %v153 = vld [vmem:[#allocation9 + $0x4] sm:$0xf]
    %v154 = vld [vmem:[#allocation9 + $0x8] sm:$0xf]
    %v155 = vld [vmem:[#allocation9 + $0xc] sm:$0xf]
    %v156 = vld [vmem:[#allocation9 + $0x10] sm:$0xf]
    %v157 = vld [vmem:[#allocation9 + $0x14] sm:$0xf]
    %v158 = vld [vmem:[#allocation9 + $0x18] sm:$0xf]
    %v159 = vld [vmem:[#allocation9 + $0x1c] sm:$0xf]
    %v160 = vld [vmem:[#allocation9 + $0x20] sm:$0xf]
    %v161 = vld [vmem:[#allocation9 + $0x24] sm:$0xf]
    %v162 = vld [vmem:[#allocation9 + $0x28] sm:$0xf]
    %v163 = vld [vmem:[#allocation9 + $0x2c] sm:$0xf]
    %v164 = vld [vmem:[#allocation9 + $0x30] sm:$0xf]
    %v165 = vld [vmem:[#allocation9 + $0x34] sm:$0xf]
    %v166 = vld [vmem:[#allocation9 + $0x38] sm:$0xf]
    %v167 = vld [vmem:[#allocation9 + $0x3c] sm:$0xf]
    %v168 = vld [vmem:[%s6] sm:$0x1]
    %v170 = vperm.slane %v168, 0
    %v188 = vunpack.c.l.b16 %v152
    %v189 = vunpack.c.l.b16 %v153
    %v190 = vunpack.c.l.b16 %v154
    %v191 = vunpack.c.l.b16 %v155
    %v192 = vunpack.c.l.b16 %v156
    %v193 = vunpack.c.l.b16 %v157
    %v194 = vunpack.c.l.b16 %v158
    %v195 = vunpack.c.l.b16 %v159
    %v196 = vunpack.c.l.b16 %v160
    %v197 = vunpack.c.l.b16 %v161
    %v198 = vunpack.c.l.b16 %v162
    %v199 = vunpack.c.l.b16 %v163
    %v200 = vunpack.c.l.b16 %v164
    %v201 = vunpack.c.l.b16 %v165
    %v202 = vunpack.c.l.b16 %v166
    %v203 = vunpack.c.l.b16 %v167
    %v204 = vpack.c.b16 %v189, %v188
    %v205 = vpack.c.b16 %v191, %v190
    %v206 = vpack.c.b16 %v193, %v192
    %v207 = vpack.c.b16 %v195, %v194
    %v208 = vpack.c.b16 %v197, %v196
    %v209 = vpack.c.b16 %v199, %v198
    %v210 = vpack.c.b16 %v201, %v200
    %v211 = vpack.c.b16 %v203, %v202
    %220 = vmatpush.bf16.msra.mxu0 %v211
    %221 = vmatpush.bf16.msra.mxu0 %v210
    %222 = vmatpush.bf16.msra.mxu0 %v209
    %223 = vmatpush.bf16.msra.mxu0 %v208
    %224 = vmatpush.bf16.msra.mxu0 %v207
    %225 = vmatpush.bf16.msra.mxu0 %v206
    %226 = vmatpush.bf16.msra.mxu0 %v205
    %227 = vmatpush.bf16.msra.mxu0 %v204
    %228 = vmatmul.bf16.gmra.mxu0 %v151
    %v229 = vpop.f32.mrf.mxu0
    %v230 = vadd.f32 %v170, %v229
    %v231 = vpop.f32.mrf.mxu0
    %232 = vdwg.mxu0
    %v233 = vmax.f32 %v230, 0.0
    %v234 = vld [vmem:[%s7] sm:$0x1]
    %v236 = vperm.slane %v234, 0
    %v238 = vmul.f32 %v233, %v236
    %239 = vadd.xlane.f32.xlu0 %v238
    %v240 = vpop.xlane.xlu0 %239
    %s241 = sld [smem:[#allocation2]]
    %v242 = vstv %s241
    %v243 = vadd.f32 %v240, %v242
    %v245 = vlaneseq
    %v246 = vand.u32 %v245, 127
    %v247 = vperm.slane %v243, %v246
    %vm249 = vcmask 57344
    %250 = vst.msk [vmem:[#allocation11] sm:$0x1] %vm249, %v247
    // Predicated region
    $region54: #{soft_q_forward.1} parent=1 // pred_check
      _
    $region55: #{soft_q_forward.1} parent=1 // pred_check_branch
      %252 = sbr.rel (0) target = $region57
    $region56: #{soft_q_forward.1} parent=1 // pred_region
      %254 = vsyncadd [#allocation5], 0
      %s256 = sshll.u32 [#allocation11], 4
      %s257 = int_to_ptr.vmem [resolvable:$true] %s256
      %s258 = sshll.u32 %s9, 4
      %s259 = int_to_ptr.hbm [resolvable:$true] %s258
      %261 = dma.vmem_to_hbm [thread:$0]  %s257, 16, %s259, [#allocation5]
    $region57: #{soft_q_forward.1} parent=1 // pred_fallthru
      _
    // Predicated region
    $region58: #{soft_q_forward.1} parent=1 // pred_check
      _
    $region59: #{soft_q_forward.1} parent=1 // pred_check_branch
      %263 = sbr.rel (0) target = $region61
    $region60: #{soft_q_forward.1} parent=1 // pred_region
      %265 = dma.done [#allocation5], 16
    $region61: #{soft_q_forward.1} parent=1 // pred_fallthru
      _
    %266 = vsyncpa [#allocation4], 1
    %267 = vsyncpa [#allocation7], 1
    %268 = vsyncpa [#allocation10], 1
    %269 = vsyncpa [#allocation5], 1

</llo_original>
